<compile_context>
chip_gen: v6e
topology: v6e:2x2x1
jax: 0.10.0
libtpu: 0.0.40
codegen_flags: <defaults>
</compile_context>

<pallas_src>
import functools

import jax
import jax.numpy as jnp
from jax.experimental import pallas as pl
from jax.experimental.pallas import tpu as pltpu

LANE = 128
SUBLANE = 8


def _round_up(n, m):
    return ((n + m - 1) // m) * m


def critic_kernel(x_ref, w1_ref, b1_ref, w2_ref, b2_ref, w3_ref, b3_ref, o_ref,
                  *, tanh_dtype):
    """Fused 3-layer MLP: tanh(x@W1+b1) -> tanh(.@W2+b2) -> .@W3+b3."""
    # Cast to the MXU operand dtype in-kernel (rides free VPU slots; avoids a
    # separate wrapper-side cast pass over x in HBM).
    x = x_ref[...].astype(w1_ref.dtype)                               # [TB, S]
    h = jnp.dot(x, w1_ref[...], preferred_element_type=jnp.float32)   # [TB, Hp] f32
    h = jnp.tanh((h + b1_ref[...]).astype(tanh_dtype))
    h = h.astype(w2_ref.dtype)
    h = jnp.dot(h, w2_ref[...], preferred_element_type=jnp.float32)   # [TB, Hp] f32
    h = jnp.tanh((h + b2_ref[...]).astype(tanh_dtype))
    h = h.astype(w3_ref.dtype)
    v = jnp.dot(h, w3_ref[...], preferred_element_type=jnp.float32)   # [TB, Ap] f32
    v = v + b3_ref[...]
    # Store only the real action_size columns (narrow but contiguous output).
    o_ref[...] = v[:, : o_ref.shape[-1]].astype(o_ref.dtype)


def pack_critic_params(params, compute_dtype=jnp.float32):
    """One-time weight packing (do this OUTSIDE the per-step path and reuse):
      - transpose PyTorch [out, in] -> [in, out] so the kernel does x @ W,
      - zero-pad the hidden width and output head to multiples of 128 lanes so
        the matmuls are lane-dense,
      - optionally cast matmul operands to bf16 (accumulation stays f32;
        recommended default on v5e/v6e/v7x deployments — f32 weights gain
        nothing on the MXU).
    Padded lanes stay exactly zero through tanh, so slicing [:, :A] of the
    padded head reproduces the unpadded computation exactly (in f32)."""
    w1, b1 = params["C1.weight"], params["C1.bias"]   # [H, S], [H]
    w2, b2 = params["C2.weight"], params["C2.bias"]   # [H, H], [H]
    w3, b3 = params["C3.weight"], params["C3.bias"]   # [A, H], [A]
    H, S = w1.shape
    A = w3.shape[0]
    Hp = _round_up(H, LANE)
    Ap = _round_up(A, LANE)

    w1_p = jnp.zeros((S, Hp), jnp.float32).at[:, :H].set(w1.T)
    w2_p = jnp.zeros((Hp, Hp), jnp.float32).at[:H, :H].set(w2.T)
    w3_p = jnp.zeros((Hp, Ap), jnp.float32).at[:H, :A].set(w3.T)
    b1_p = jnp.zeros((1, Hp), jnp.float32).at[0, :H].set(b1)
    b2_p = jnp.zeros((1, Hp), jnp.float32).at[0, :H].set(b2)
    b3_p = jnp.zeros((1, Ap), jnp.float32).at[0, :A].set(b3)

    return {
        "w1": w1_p.astype(compute_dtype),
        "w2": w2_p.astype(compute_dtype),
        "w3": w3_p.astype(compute_dtype),
        "b1": b1_p, "b2": b2_p, "b3": b3_p,   # biases stay f32 (added post-accumulate)
        "dims": (S, H, A, Hp, Ap),
        "compute_dtype": compute_dtype,
    }


def critic_forward(x, packed, *, batch_tile=2048, min_tiles=None,
                   tanh_dtype=jnp.float32):
    """x: [B, state_size]. Returns [B, action_size] float32.

    tanh_dtype=jnp.bfloat16 is an optional v6e/v7x-only fast path (bf16 EUP);
    keep it float32 on v5e."""
    S, H, A, Hp, Ap = packed["dims"]
    B = x.shape[0]

    # Even batch tiling (multiples of 8 sublanes, no pathological padding).
    B8 = _round_up(max(B, 1), SUBLANE)
    if min_tiles is None:
        # Give v7x's two TensorCores something to split once the batch is
        # non-trivial; tiny batches stay at a single grid step.
        min_tiles = 2 if B8 >= 256 else 1
    n_tiles = max(pl.cdiv(B8, batch_tile), min_tiles)
    TB = _round_up(pl.cdiv(B8, n_tiles), SUBLANE)
    Bp = n_tiles * TB

    x_p = x if Bp == B else jnp.pad(x, ((0, Bp - B), (0, 0)))

    weight_bytes = sum(packed[k].size * packed[k].dtype.itemsize
                       for k in ("w1", "w2", "w3", "b1", "b2", "b3"))
    cost = pl.CostEstimate(
        flops=2 * Bp * (S * Hp + Hp * Hp + Hp * Ap),
        transcendentals=2 * Bp * Hp,
        bytes_accessed=(x_p.size * x_p.dtype.itemsize + weight_bytes + Bp * A * 4),
    )

    # Rough resident-VMEM estimate: double-buffered weights + x/out tiles plus
    # a few [TB, Hp] f32 intermediates.  Only override the scoped-VMEM limit
    # when very large tiles would blow the v5e 16 MiB default.
    est_vmem = (2 * weight_bytes
                + 2 * TB * S * x_p.dtype.itemsize
                + 2 * TB * A * 4
                + 6 * TB * Hp * 4)
    vmem_limit = None
    if est_vmem > 12 * 1024 * 1024:
        vmem_limit = min(int(est_vmem * 3 // 2), 64 * 1024 * 1024)

    const2d = lambda shape: pl.BlockSpec(shape, lambda i: (0, 0))

    out = pl.pallas_call(
        functools.partial(critic_kernel, tanh_dtype=tanh_dtype),
        out_shape=jax.ShapeDtypeStruct((Bp, A), jnp.float32),
        grid=(n_tiles,),
        in_specs=[
            pl.BlockSpec((TB, S), lambda i: (i, 0)),   # x: tiled over batch
            const2d((S, Hp)), const2d((1, Hp)),        # W1, b1 (VMEM-resident)
            const2d((Hp, Hp)), const2d((1, Hp)),       # W2, b2
            const2d((Hp, Ap)), const2d((1, Ap)),       # W3, b3
        ],
        out_specs=pl.BlockSpec((TB, A), lambda i: (i, 0)),  # narrow, contiguous output
        compiler_params=pltpu.CompilerParams(
            dimension_semantics=("parallel",),               # v7x: use both TensorCores
            vmem_limit_bytes=vmem_limit),
        cost_estimate=cost,
    )(x_p, packed["w1"], packed["b1"], packed["w2"], packed["b2"],
      packed["w3"], packed["b3"])

    return out[:B]


def init_critic_params(key, action_size, state_size, hidden_size=64):
    """Deterministic synthetic init, PyTorch nn.Linear shapes: W=[out,in], b=[out]."""
    ks = jax.random.split(key, 6)
    def lin(kw, kb, fan_in, fan_out):
        bound = 1.0 / jnp.sqrt(fan_in)
        w = jax.random.uniform(kw, (fan_out, fan_in), jnp.float32, -bound, bound)
        b = jax.random.uniform(kb, (fan_out,), jnp.float32, -bound, bound)
        return w, b
    w1, b1 = lin(ks[0], ks[1], state_size, hidden_size)
    w2, b2 = lin(ks[2], ks[3], hidden_size, hidden_size)
    w3, b3 = lin(ks[4], ks[5], hidden_size, action_size)
    return {
        "C1.weight": w1, "C1.bias": b1,
        "C2.weight": w2, "C2.bias": b2,
        "C3.weight": w3, "C3.bias": b3,
    }


def critic_reference(x, p):
    """Pure-JAX reference matching PyTorch semantics."""
    v = jnp.tanh(x @ p["C1.weight"].T + p["C1.bias"])
    v = jnp.tanh(v @ p["C2.weight"].T + p["C2.bias"])
    v = v @ p["C3.weight"].T + p["C3.bias"]
    return v


if __name__ == "__main__":
    key = jax.random.PRNGKey(0)
    k_params, k_x = jax.random.split(key)

    batch = 8
    state_size = 32
    hidden_size = 64
    action_size = 4

    params = init_critic_params(k_params, action_size, state_size, hidden_size)
    x = jax.random.normal(k_x, (batch, state_size), jnp.float32)
    ref = critic_reference(x, params)

    # f32 path: matches the PyTorch/JAX reference tightly.
    packed_f32 = pack_critic_params(params, compute_dtype=jnp.float32)
    out = critic_forward(x, packed_f32)
    jax.block_until_ready(out)
    assert out.shape == (batch, action_size)
    assert jnp.allclose(out, ref, atol=1e-5, rtol=1e-5), "f32 mismatch vs reference"

    # bf16-MXU / f32-accumulate fast path (recommended on all generations);
    # loose tolerance expected from bf16 operand quantization.
    packed_bf16 = pack_critic_params(params, compute_dtype=jnp.bfloat16)
    out_bf16 = critic_forward(x, packed_bf16)
    jax.block_until_ready(out_bf16)
    assert out_bf16.shape == (batch, action_size)
    assert jnp.allclose(out_bf16, ref, atol=5e-2, rtol=5e-2), "bf16 mismatch vs reference"

    # Larger-batch check exercising multi-tile grid + even-tiling path.
    k_big = jax.random.PRNGKey(1)
    x_big = jax.random.normal(k_big, (300, state_size), jnp.float32)
    out_big = critic_forward(x_big, packed_f32)
    jax.block_until_ready(out_big)
    assert out_big.shape == (300, action_size)
    assert jnp.allclose(out_big, critic_reference(x_big, params),
                        atol=1e-5, rtol=1e-5), "multi-tile mismatch vs reference"

    print("KERNEL_OK")
</pallas_src>

<mosaic_0001>
module attributes {stable_mosaic.version = 11 : i64} {
  func.func @critic_kernel(%arg0: i32, %arg1: memref<8x32xf32, #tpu.memory_space<vmem>>, %arg2: memref<32x128xf32, #tpu.memory_space<vmem>>, %arg3: memref<1x128xf32, #tpu.memory_space<vmem>>, %arg4: memref<128x128xf32, #tpu.memory_space<vmem>>, %arg5: memref<1x128xf32, #tpu.memory_space<vmem>>, %arg6: memref<128x128xf32, #tpu.memory_space<vmem>>, %arg7: memref<1x128xf32, #tpu.memory_space<vmem>>, %arg8: memref<8x4xf32, #tpu.memory_space<vmem>>) attributes {dimension_semantics = [#tpu.dimension_semantics<parallel>], iteration_bounds = array<i64: 1>, scalar_prefetch = 0 : i64, scratch_operands = 0 : i64, tpu.core_type = #tpu.core_type<tc>, window_params = [{transform_indices = @transform_0, window_bounds = array<i64: 8, 32>}, {pipeline_mode = #tpu.pipeline_mode<synchronous>, transform_indices = @transform_1, window_bounds = array<i64: 32, 128>}, {pipeline_mode = #tpu.pipeline_mode<synchronous>, transform_indices = @transform_2, window_bounds = array<i64: 1, 128>}, {pipeline_mode = #tpu.pipeline_mode<synchronous>, transform_indices = @transform_3, window_bounds = array<i64: 128, 128>}, {pipeline_mode = #tpu.pipeline_mode<synchronous>, transform_indices = @transform_4, window_bounds = array<i64: 1, 128>}, {pipeline_mode = #tpu.pipeline_mode<synchronous>, transform_indices = @transform_5, window_bounds = array<i64: 128, 128>}, {pipeline_mode = #tpu.pipeline_mode<synchronous>, transform_indices = @transform_6, window_bounds = array<i64: 1, 128>}, {transform_indices = @transform_7, window_bounds = array<i64: 8, 4>}]} {
    %c0 = arith.constant 0 : index
    %c0_0 = arith.constant 0 : index
    %0 = vector.load %arg1[%c0, %c0_0] : memref<8x32xf32, #tpu.memory_space<vmem>>, vector<8x32xf32>
    %c0_1 = arith.constant 0 : index
    %c0_2 = arith.constant 0 : index
    %1 = vector.load %arg2[%c0_1, %c0_2] : memref<32x128xf32, #tpu.memory_space<vmem>>, vector<32x128xf32>
    %cst = arith.constant dense<0.000000e+00> : vector<8x128xf32>
    %2 = tpu.matmul %0, %1, %cst {dimension_numbers = #tpu.dot_dimension_numbers<[1], [0], [0], [1], [0, 0, 1, 1], [], []>} : vector<8x32xf32>, vector<32x128xf32>, vector<8x128xf32> -> vector<8x128xf32>
    %c0_3 = arith.constant 0 : index
    %c0_4 = arith.constant 0 : index
    %3 = vector.load %arg3[%c0_3, %c0_4] : memref<1x128xf32, #tpu.memory_space<vmem>>, vector<1x128xf32>
    %4 = vector.broadcast %3 : vector<1x128xf32> to vector<8x128xf32>
    %5 = arith.addf %2, %4 : vector<8x128xf32>
    %6 = math.tanh %5 : vector<8x128xf32>
    %c0_5 = arith.constant 0 : index
    %c0_6 = arith.constant 0 : index
    %7 = vector.load %arg4[%c0_5, %c0_6] : memref<128x128xf32, #tpu.memory_space<vmem>>, vector<128x128xf32>
    %cst_7 = arith.constant dense<0.000000e+00> : vector<8x128xf32>
    %8 = tpu.matmul %6, %7, %cst_7 {dimension_numbers = #tpu.dot_dimension_numbers<[1], [0], [0], [1], [0, 0, 1, 1], [], []>} : vector<8x128xf32>, vector<128x128xf32>, vector<8x128xf32> -> vector<8x128xf32>
    %c0_8 = arith.constant 0 : index
    %c0_9 = arith.constant 0 : index
    %9 = vector.load %arg5[%c0_8, %c0_9] : memref<1x128xf32, #tpu.memory_space<vmem>>, vector<1x128xf32>
    %10 = vector.broadcast %9 : vector<1x128xf32> to vector<8x128xf32>
    %11 = arith.addf %8, %10 : vector<8x128xf32>
    %12 = math.tanh %11 : vector<8x128xf32>
    %c0_10 = arith.constant 0 : index
    %c0_11 = arith.constant 0 : index
    %13 = vector.load %arg6[%c0_10, %c0_11] : memref<128x128xf32, #tpu.memory_space<vmem>>, vector<128x128xf32>
    %cst_12 = arith.constant dense<0.000000e+00> : vector<8x128xf32>
    %14 = tpu.matmul %12, %13, %cst_12 {dimension_numbers = #tpu.dot_dimension_numbers<[1], [0], [0], [1], [0, 0, 1, 1], [], []>} : vector<8x128xf32>, vector<128x128xf32>, vector<8x128xf32> -> vector<8x128xf32>
    %c0_13 = arith.constant 0 : index
    %c0_14 = arith.constant 0 : index
    %15 = vector.load %arg7[%c0_13, %c0_14] : memref<1x128xf32, #tpu.memory_space<vmem>>, vector<1x128xf32>
    %16 = vector.broadcast %15 : vector<1x128xf32> to vector<8x128xf32>
    %17 = arith.addf %14, %16 : vector<8x128xf32>
    %18 = vector.extract_strided_slice %17 {offsets = [0, 0], sizes = [8, 4], strides = [1, 1]} : vector<8x128xf32> to vector<8x4xf32>
    %c0_15 = arith.constant 0 : index
    %c0_16 = arith.constant 0 : index
    %19 = vector.load %arg8[%c0_15, %c0_16] : memref<8x4xf32, #tpu.memory_space<vmem>>, vector<8x4xf32>
    tpu.vector_store %arg8[%c0_15, %c0_16], %18 {strides = array<i32>} : memref<8x4xf32, #tpu.memory_space<vmem>>, vector<8x4xf32>,
    return
  }
  func.func @transform_0(%arg0: i32) -> (i32, i32) {
    %c0_i32 = arith.constant 0 : i32
    %c0_i32_0 = arith.constant 0 : i32
    return %arg0, %c0_i32 : i32, i32
  }
  func.func @transform_1(%arg0: i32) -> (i32, i32) {
    %c0_i32 = arith.constant 0 : i32
    %c0_i32_0 = arith.constant 0 : i32
    %c0_i32_1 = arith.constant 0 : i32
    return %c0_i32, %c0_i32_0 : i32, i32
  }
  func.func @transform_2(%arg0: i32) -> (i32, i32) {
    %c0_i32 = arith.constant 0 : i32
    %c0_i32_0 = arith.constant 0 : i32
    %c0_i32_1 = arith.constant 0 : i32
    return %c0_i32, %c0_i32_0 : i32, i32
  }
  func.func @transform_3(%arg0: i32) -> (i32, i32) {
    %c0_i32 = arith.constant 0 : i32
    %c0_i32_0 = arith.constant 0 : i32
    %c0_i32_1 = arith.constant 0 : i32
    return %c0_i32, %c0_i32_0 : i32, i32
  }
  func.func @transform_4(%arg0: i32) -> (i32, i32) {
    %c0_i32 = arith.constant 0 : i32
    %c0_i32_0 = arith.constant 0 : i32
    %c0_i32_1 = arith.constant 0 : i32
    return %c0_i32, %c0_i32_0 : i32, i32
  }
  func.func @transform_5(%arg0: i32) -> (i32, i32) {
    %c0_i32 = arith.constant 0 : i32
    %c0_i32_0 = arith.constant 0 : i32
    %c0_i32_1 = arith.constant 0 : i32
    return %c0_i32, %c0_i32_0 : i32, i32
  }
  func.func @transform_6(%arg0: i32) -> (i32, i32) {
    %c0_i32 = arith.constant 0 : i32
    %c0_i32_0 = arith.constant 0 : i32
    %c0_i32_1 = arith.constant 0 : i32
    return %c0_i32, %c0_i32_0 : i32, i32
  }
  func.func @transform_7(%arg0: i32) -> (i32, i32) {
    %c0_i32 = arith.constant 0 : i32
    %c0_i32_0 = arith.constant 0 : i32
    return %arg0, %c0_i32 : i32, i32
  }
}

</mosaic_0001>

<llo_original>
// kernel: tpu_custom_call.1
$region0: #{tpu_custom_call.1}
  #allocation0 [shape = 'u32[]', space=smem, size = 0x4, offset = 0x4, fixed_abs, tag = 'smem constant byte address 0x4 - core index']
  #allocation1 [shape = 'u32[144,128]{1,0:T(1,128)}', space=vmem, size = 0x12000, scoped, tag = 'internal scratch']
  %s0 = inlined_call_operand.hbm [shape: f32[8,32], index: 0, kind: input, shape index: {}]
  %s1 = inlined_call_operand.hbm [shape: f32[32,128], index: 1, kind: input, shape index: {}]
  %s2 = inlined_call_operand.vmem [shape: f32[1,128], index: 2, kind: input, shape index: {}]
  %s3 = inlined_call_operand.hbm [shape: f32[128,128], index: 3, kind: input, shape index: {}]
  %s4 = inlined_call_operand.vmem [shape: f32[1,128], index: 4, kind: input, shape index: {}]
  %s5 = inlined_call_operand.hbm [shape: f32[128,128], index: 5, kind: input, shape index: {}]
  %s6 = inlined_call_operand.vmem [shape: f32[1,128], index: 6, kind: input, shape index: {}]
  %s7 = inlined_call_operand.vmem [shape: f32[8,4], index: 7, kind: output, shape index: {}]
  %s8 = sld [smem:[#allocation0]]
  $region54: #{tpu_custom_call.1} parent=0
    _
  %s10 = ssub.s32 1, %s8
  %s11 = scalar_select 0, %s10, %s8
  $region1: #{tpu_custom_call.1} parent=0
    #allocation2 [shape = 'u8[4096]{0}', space=vmem, size = 0x1000, scoped, tag = 'input window, operand 0, single buffered']
    #allocation3 [shape = 's32[1]{0}', space=sflag, size = 0x4, scoped, tag = 'scoped memory for tpu_custom_call.1']
    #allocation4 [shape = 'u8[16384]{0}', space=vmem, size = 0x4000, scoped, tag = 'input window, operand 1, single buffered']
    #allocation5 [shape = 's32[1]{0}', space=sflag, size = 0x4, scoped, tag = 'scoped memory for tpu_custom_call.1']
    #allocation6 [shape = 'u8[65536]{0}', space=vmem, size = 0x10000, scoped, tag = 'input window, operand 3, single buffered']
    #allocation7 [shape = 'u8[65536]{0}', space=vmem, size = 0x10000, scoped, tag = 'input window, operand 5, single buffered']
    #allocation8 [shape = 's32[1]{0}', space=sflag, size = 0x4, scoped, tag = 'scoped memory for tpu_custom_call.1']
    %12 = vsyncpa [#allocation3], 0
    %13 = vsyncpa [#allocation5], 0
    %14 = vsyncpa [#allocation8], 0
    // Predicated region
    $region2: #{tpu_custom_call.1} parent=1 // pred_check
      _
    $region3: #{tpu_custom_call.1} parent=1 // pred_check_branch
      %16 = sbr.rel (0) target = $region5
    $region4: #{tpu_custom_call.1} parent=1 // pred_region
      %s18 = ssub.s32 128, 128
      %19 = vsyncadd [#allocation3], %s18
      %s21 = sshll.u32 [#allocation2], 4
      %s22 = int_to_ptr.vmem [resolvable:$true] %s21
      %24 = dma.hbm_to_vmem [thread:$0]  %s0, 128, %s22, [#allocation3]
    $region5: #{tpu_custom_call.1} parent=1 // pred_fallthru
      _
    // Predicated region
    $region6: #{tpu_custom_call.1} parent=1 // pred_check
      _
    $region7: #{tpu_custom_call.1} parent=1 // pred_check_branch
      %26 = sbr.rel (0) target = $region9
    $region8: #{tpu_custom_call.1} parent=1 // pred_region
      %s28 = ssub.s32 512, 512
      %29 = vsyncadd [#allocation5], %s28
      %s30 = sshll.u32 [#allocation4], 4
      %s31 = int_to_ptr.vmem [resolvable:$true] %s30
      %36 = dma.hbm_to_vmem [thread:$0]  %s1, 512, %s31, [#allocation5], 128, 128, 8
    $region9: #{tpu_custom_call.1} parent=1 // pred_fallthru
      _
    // Predicated region
    $region10: #{tpu_custom_call.1} parent=1 // pred_check
      _
    $region11: #{tpu_custom_call.1} parent=1 // pred_check_branch
      %38 = sbr.rel (0) target = $region13
    $region12: #{tpu_custom_call.1} parent=1 // pred_region
      _
    $region13: #{tpu_custom_call.1} parent=1 // pred_fallthru
      _
    // Predicated region
    $region14: #{tpu_custom_call.1} parent=1 // pred_check
      _
    $region15: #{tpu_custom_call.1} parent=1 // pred_check_branch
      %40 = sbr.rel (0) target = $region17
    $region16: #{tpu_custom_call.1} parent=1 // pred_region
      %s42 = ssub.s32 2048, 2048
      %43 = vsyncadd [#allocation5], %s42
      %s44 = sshll.u32 [#allocation6], 4
      %s45 = int_to_ptr.vmem [resolvable:$true] %s44
      %50 = dma.hbm_to_vmem [thread:$0]  %s3, 2048, %s45, [#allocation5], 128, 128, 8
    $region17: #{tpu_custom_call.1} parent=1 // pred_fallthru
      _
    // Predicated region
    $region18: #{tpu_custom_call.1} parent=1 // pred_check
      _
    $region19: #{tpu_custom_call.1} parent=1 // pred_check_branch
      %52 = sbr.rel (0) target = $region21
    $region20: #{tpu_custom_call.1} parent=1 // pred_region
      _
    $region21: #{tpu_custom_call.1} parent=1 // pred_fallthru
      _
    // Predicated region
    $region22: #{tpu_custom_call.1} parent=1 // pred_check
      _
    $region23: #{tpu_custom_call.1} parent=1 // pred_check_branch
      %54 = sbr.rel (0) target = $region25
    $region24: #{tpu_custom_call.1} parent=1 // pred_region
      %s56 = ssub.s32 2048, 2048
      %57 = vsyncadd [#allocation8], %s56
      %s58 = sshll.u32 [#allocation7], 4
      %s59 = int_to_ptr.vmem [resolvable:$true] %s58
      %64 = dma.hbm_to_vmem [thread:$0]  %s5, 2048, %s59, [#allocation8], 128, 128, 8
    $region25: #{tpu_custom_call.1} parent=1 // pred_fallthru
      _
    // Predicated region
    $region26: #{tpu_custom_call.1} parent=1 // pred_check
      _
    $region27: #{tpu_custom_call.1} parent=1 // pred_check_branch
      %66 = sbr.rel (0) target = $region29
    $region28: #{tpu_custom_call.1} parent=1 // pred_region
      _
    $region29: #{tpu_custom_call.1} parent=1 // pred_fallthru
      _
    // Predicated region
    $region30: #{tpu_custom_call.1} parent=1 // pred_check
      _
    $region31: #{tpu_custom_call.1} parent=1 // pred_check_branch
      %68 = sbr.rel (0) target = $region33
    $region32: #{tpu_custom_call.1} parent=1 // pred_region
      %69 = dma.done [#allocation3], 128
    $region33: #{tpu_custom_call.1} parent=1 // pred_fallthru
      _
    // Predicated region
    $region34: #{tpu_custom_call.1} parent=1 // pred_check
      _
    $region35: #{tpu_custom_call.1} parent=1 // pred_check_branch
      %71 = sbr.rel (0) target = $region37
    $region36: #{tpu_custom_call.1} parent=1 // pred_region
      %72 = dma.done [#allocation5], 512
    $region37: #{tpu_custom_call.1} parent=1 // pred_fallthru
      _
    // Predicated region
    $region38: #{tpu_custom_call.1} parent=1 // pred_check
      _
    $region39: #{tpu_custom_call.1} parent=1 // pred_check_branch
      %74 = sbr.rel (0) target = $region41
    $region40: #{tpu_custom_call.1} parent=1 // pred_region
      %75 = dma.done [#allocation5], 2048
    $region41: #{tpu_custom_call.1} parent=1 // pred_fallthru
      _
    // Predicated region
    $region42: #{tpu_custom_call.1} parent=1 // pred_check
      _
    $region43: #{tpu_custom_call.1} parent=1 // pred_check_branch
      %77 = sbr.rel (0) target = $region45
    $region44: #{tpu_custom_call.1} parent=1 // pred_region
      %78 = dma.done [#allocation8], 2048
    $region45: #{tpu_custom_call.1} parent=1 // pred_fallthru
      _
    %v79 = vld [vmem:[#allocation2] sm:$0xff]
    %v80 = vld [vmem:[#allocation4] sm:$0xff]
    %v81 = vld [vmem:[#allocation4 + $0x8] sm:$0xff]
    %v82 = vld [vmem:[#allocation4 + $0x10] sm:$0xff]
    %v83 = vld [vmem:[#allocation4 + $0x18] sm:$0xff]
    %v84 = vld [vmem:[%s2] sm:$0x1]
    %v86 = vlaneseq
    %v87 = vshrl.u32 %v86, 7
    %v88 = vsub.s32 0, %v87
    %v89 = vrot.slane %v84, %v88
    %vm91 = vcmask 261120
    %v93 = vsel %vm91, %v79, 0
    %95 = vmatprep.subr.mxu0 0.0
    %96 = vmatpush1.msra.mxu0 0.0
    %97 = vmatprep.subr.mxu0 0.0
    %98 = vmatpush1.msra.mxu0 0.0
    %99 = vmatprep.subr.mxu0 0.0
    %100 = vmatpush1.msra.mxu0 0.0
    %101 = vmatprep.subr.mxu0 0.0
    %102 = vmatpush1.msra.mxu0 0.0
    %103 = vmatprep.subr.mxu0 0.0
    %104 = vmatpush1.msra.mxu0 0.0
    %105 = vmatprep.subr.mxu0 0.0
    %106 = vmatpush1.msra.mxu0 0.0
    %107 = vmatprep.subr.mxu0 0.0
    %108 = vmatpush1.msra.mxu0 0.0
    %109 = vmatprep.subr.mxu0 0.0
    %110 = vmatpush1.msra.mxu0 0.0
    %111 = vmatprep.subr.mxu0 0.0
    %112 = vmatpush1.msra.mxu0 0.0
    %113 = vmatprep.subr.mxu0 0.0
    %114 = vmatpush1.msra.mxu0 0.0
    %115 = vmatprep.subr.mxu0 0.0
    %116 = vmatpush1.msra.mxu0 0.0
    %117 = vmatprep.subr.mxu0 0.0
    %118 = vmatpush1.msra.mxu0 0.0
    %119 = vmatprep.subr.mxu0 0.0
    %120 = vmatpush1.msra.mxu0 %v83
    %121 = vmatprep.subr.mxu0 0.0
    %122 = vmatpush1.msra.mxu0 %v82
    %123 = vmatprep.subr.mxu0 0.0
    %124 = vmatpush1.msra.mxu0 %v81
    %125 = vmatprep.subr.mxu0 0.0
    %126 = vmatpush1.msra.mxu0 %v80
    %127 = vmatprep.subr.mxu0 0.0
    %128 = vmatpush2.msra.mxu0 0.0
    %129 = vmatprep.subr.mxu0 0.0
    %130 = vmatpush2.msra.mxu0 0.0
    %131 = vmatprep.subr.mxu0 0.0
    %132 = vmatpush2.msra.mxu0 0.0
    %133 = vmatprep.subr.mxu0 0.0
    %134 = vmatpush2.msra.mxu0 0.0
    %135 = vmatprep.subr.mxu0 0.0
    %136 = vmatpush2.msra.mxu0 0.0
    %137 = vmatprep.subr.mxu0 0.0
    %138 = vmatpush2.msra.mxu0 0.0
    %139 = vmatprep.subr.mxu0 0.0
    %140 = vmatpush2.msra.mxu0 0.0
    %141 = vmatprep.subr.mxu0 0.0
    %142 = vmatpush2.msra.mxu0 0.0
    %143 = vmatprep.subr.mxu0 0.0
    %144 = vmatpush2.msra.mxu0 0.0
    %145 = vmatprep.subr.mxu0 0.0
    %146 = vmatpush2.msra.mxu0 0.0
    %147 = vmatprep.subr.mxu0 0.0
    %148 = vmatpush2.msra.mxu0 0.0
    %149 = vmatprep.subr.mxu0 0.0
    %150 = vmatpush2.msra.mxu0 0.0
    %151 = vmatprep.subr.mxu0 0.0
    %152 = vmatpush2.msra.mxu0 0.0
    %153 = vmatprep.subr.mxu0 0.0
    %154 = vmatpush2.msra.mxu0 0.0
    %155 = vmatprep.subr.mxu0 0.0
    %156 = vmatpush2.msra.mxu0 0.0
    %157 = vmatprep.subr.mxu0 0.0
    %158 = vmatpush2.msra.mxu0 0.0
    %159 = vmatprep.mubr.f32.mxu0 0.0
    %160 = vmatmul.mubr.f32.gmra.mxu0 %v93
    %v161 = vpop.f32.mrf.mxu0
    %v162 = vadd.f32 %v89, %v161
    %v163 = vpop.f32.mrf.mxu0
    %164 = vdwg.mxu0
    %v165 = vtanh.pop %v162
    %v166 = vld [vmem:[#allocation6] sm:$0xff]
    %v167 = vld [vmem:[#allocation6 + $0x8] sm:$0xff]
    %v168 = vld [vmem:[#allocation6 + $0x10] sm:$0xff]
    %v169 = vld [vmem:[#allocation6 + $0x18] sm:$0xff]
    %v170 = vld [vmem:[#allocation6 + $0x20] sm:$0xff]
    %v171 = vld [vmem:[#allocation6 + $0x28] sm:$0xff]
    %v172 = vld [vmem:[#allocation6 + $0x30] sm:$0xff]
    %v173 = vld [vmem:[#allocation6 + $0x38] sm:$0xff]
    %v174 = vld [vmem:[#allocation6 + $0x40] sm:$0xff]
    %v175 = vld [vmem:[#allocation6 + $0x48] sm:$0xff]
    %v176 = vld [vmem:[#allocation6 + $0x50] sm:$0xff]
    %v177 = vld [vmem:[#allocation6 + $0x58] sm:$0xff]
    %v178 = vld [vmem:[#allocation6 + $0x60] sm:$0xff]
    %v179 = vld [vmem:[#allocation6 + $0x68] sm:$0xff]
    %v180 = vld [vmem:[#allocation6 + $0x70] sm:$0xff]
    %v181 = vld [vmem:[#allocation6 + $0x78] sm:$0xff]
    %v182 = vld [vmem:[%s4] sm:$0x1]
    %v184 = vlaneseq
    %v185 = vshrl.u32 %v184, 7
    %v186 = vsub.s32 0, %v185
    %v187 = vrot.slane %v182, %v186
    %189 = vmatprep.subr.mxu0 0.0
    %190 = vmatpush1.msra.mxu0 %v181
    %191 = vmatprep.subr.mxu0 0.0
    %192 = vmatpush1.msra.mxu0 %v180
    %193 = vmatprep.subr.mxu0 0.0
    %194 = vmatpush1.msra.mxu0 %v179
    %195 = vmatprep.subr.mxu0 0.0
    %196 = vmatpush1.msra.mxu0 %v178
    %197 = vmatprep.subr.mxu0 0.0
    %198 = vmatpush1.msra.mxu0 %v177
    %199 = vmatprep.subr.mxu0 0.0
    %200 = vmatpush1.msra.mxu0 %v176
    %201 = vmatprep.subr.mxu0 0.0
    %202 = vmatpush1.msra.mxu0 %v175
    %203 = vmatprep.subr.mxu0 0.0
    %204 = vmatpush1.msra.mxu0 %v174
    %205 = vmatprep.subr.mxu0 0.0
    %206 = vmatpush1.msra.mxu0 %v173
    %207 = vmatprep.subr.mxu0 0.0
    %208 = vmatpush1.msra.mxu0 %v172
    %209 = vmatprep.subr.mxu0 0.0
    %210 = vmatpush1.msra.mxu0 %v171
    %211 = vmatprep.subr.mxu0 0.0
    %212 = vmatpush1.msra.mxu0 %v170
    %213 = vmatprep.subr.mxu0 0.0
    %214 = vmatpush1.msra.mxu0 %v169
    %215 = vmatprep.subr.mxu0 0.0
    %216 = vmatpush1.msra.mxu0 %v168
    %217 = vmatprep.subr.mxu0 0.0
    %218 = vmatpush1.msra.mxu0 %v167
    %219 = vmatprep.subr.mxu0 0.0
    %220 = vmatpush1.msra.mxu0 %v166
    %221 = vmatprep.subr.mxu0 0.0
    %222 = vmatpush2.msra.mxu0 0.0
    %223 = vmatprep.subr.mxu0 0.0
    %224 = vmatpush2.msra.mxu0 0.0
    %225 = vmatprep.subr.mxu0 0.0
    %226 = vmatpush2.msra.mxu0 0.0
    %227 = vmatprep.subr.mxu0 0.0
    %228 = vmatpush2.msra.mxu0 0.0
    %229 = vmatprep.subr.mxu0 0.0
    %230 = vmatpush2.msra.mxu0 0.0
    %231 = vmatprep.subr.mxu0 0.0
    %232 = vmatpush2.msra.mxu0 0.0
    %233 = vmatprep.subr.mxu0 0.0
    %234 = vmatpush2.msra.mxu0 0.0
    %235 = vmatprep.subr.mxu0 0.0
    %236 = vmatpush2.msra.mxu0 0.0
    %237 = vmatprep.subr.mxu0 0.0
    %238 = vmatpush2.msra.mxu0 0.0
    %239 = vmatprep.subr.mxu0 0.0
    %240 = vmatpush2.msra.mxu0 0.0
    %241 = vmatprep.subr.mxu0 0.0
    %242 = vmatpush2.msra.mxu0 0.0
    %243 = vmatprep.subr.mxu0 0.0
    %244 = vmatpush2.msra.mxu0 0.0
    %245 = vmatprep.subr.mxu0 0.0
    %246 = vmatpush2.msra.mxu0 0.0
    %247 = vmatprep.subr.mxu0 0.0
    %248 = vmatpush2.msra.mxu0 0.0
    %249 = vmatprep.subr.mxu0 0.0
    %250 = vmatpush2.msra.mxu0 0.0
    %251 = vmatprep.subr.mxu0 0.0
    %252 = vmatpush2.msra.mxu0 0.0
    %253 = vmatprep.mubr.f32.mxu0 0.0
    %254 = vmatmul.mubr.f32.gmra.mxu0 %v165
    %v255 = vpop.f32.mrf.mxu0
    %v256 = vadd.f32 %v187, %v255
    %v257 = vpop.f32.mrf.mxu0
    %258 = vdwg.mxu0
    %v259 = vtanh.pop %v256
    %v260 = vld [vmem:[#allocation7] sm:$0xff]
    %v261 = vld [vmem:[#allocation7 + $0x8] sm:$0xff]
    %v262 = vld [vmem:[#allocation7 + $0x10] sm:$0xff]
    %v263 = vld [vmem:[#allocation7 + $0x18] sm:$0xff]
    %v264 = vld [vmem:[#allocation7 + $0x20] sm:$0xff]
    %v265 = vld [vmem:[#allocation7 + $0x28] sm:$0xff]
    %v266 = vld [vmem:[#allocation7 + $0x30] sm:$0xff]
    %v267 = vld [vmem:[#allocation7 + $0x38] sm:$0xff]
    %v268 = vld [vmem:[#allocation7 + $0x40] sm:$0xff]
    %v269 = vld [vmem:[#allocation7 + $0x48] sm:$0xff]
    %v270 = vld [vmem:[#allocation7 + $0x50] sm:$0xff]
    %v271 = vld [vmem:[#allocation7 + $0x58] sm:$0xff]
    %v272 = vld [vmem:[#allocation7 + $0x60] sm:$0xff]
    %v273 = vld [vmem:[#allocation7 + $0x68] sm:$0xff]
    %v274 = vld [vmem:[#allocation7 + $0x70] sm:$0xff]
    %v275 = vld [vmem:[#allocation7 + $0x78] sm:$0xff]
    %v276 = vld [vmem:[%s6] sm:$0x1]
    %v278 = vlaneseq
    %v279 = vshrl.u32 %v278, 7
    %v280 = vsub.s32 0, %v279
    %v281 = vrot.slane %v276, %v280
    %283 = vmatprep.subr.mxu0 0.0
    %284 = vmatpush1.msra.mxu0 %v275
    %285 = vmatprep.subr.mxu0 0.0
    %286 = vmatpush1.msra.mxu0 %v274
    %287 = vmatprep.subr.mxu0 0.0
    %288 = vmatpush1.msra.mxu0 %v273
    %289 = vmatprep.subr.mxu0 0.0
    %290 = vmatpush1.msra.mxu0 %v272
    %291 = vmatprep.subr.mxu0 0.0
    %292 = vmatpush1.msra.mxu0 %v271
    %293 = vmatprep.subr.mxu0 0.0
    %294 = vmatpush1.msra.mxu0 %v270
    %295 = vmatprep.subr.mxu0 0.0
    %296 = vmatpush1.msra.mxu0 %v269
    %297 = vmatprep.subr.mxu0 0.0
    %298 = vmatpush1.msra.mxu0 %v268
    %299 = vmatprep.subr.mxu0 0.0
    %300 = vmatpush1.msra.mxu0 %v267
    %301 = vmatprep.subr.mxu0 0.0
    %302 = vmatpush1.msra.mxu0 %v266
    %303 = vmatprep.subr.mxu0 0.0
    %304 = vmatpush1.msra.mxu0 %v265
    %305 = vmatprep.subr.mxu0 0.0
    %306 = vmatpush1.msra.mxu0 %v264
    %307 = vmatprep.subr.mxu0 0.0
    %308 = vmatpush1.msra.mxu0 %v263
    %309 = vmatprep.subr.mxu0 0.0
    %310 = vmatpush1.msra.mxu0 %v262
    %311 = vmatprep.subr.mxu0 0.0
    %312 = vmatpush1.msra.mxu0 %v261
    %313 = vmatprep.subr.mxu0 0.0
    %314 = vmatpush1.msra.mxu0 %v260
    %315 = vmatprep.subr.mxu0 0.0
    %316 = vmatpush2.msra.mxu0 0.0
    %317 = vmatprep.subr.mxu0 0.0
    %318 = vmatpush2.msra.mxu0 0.0
    %319 = vmatprep.subr.mxu0 0.0
    %320 = vmatpush2.msra.mxu0 0.0
    %321 = vmatprep.subr.mxu0 0.0
    %322 = vmatpush2.msra.mxu0 0.0
    %323 = vmatprep.subr.mxu0 0.0
    %324 = vmatpush2.msra.mxu0 0.0
    %325 = vmatprep.subr.mxu0 0.0
    %326 = vmatpush2.msra.mxu0 0.0
    %327 = vmatprep.subr.mxu0 0.0
    %328 = vmatpush2.msra.mxu0 0.0
    %329 = vmatprep.subr.mxu0 0.0
    %330 = vmatpush2.msra.mxu0 0.0
    %331 = vmatprep.subr.mxu0 0.0
    %332 = vmatpush2.msra.mxu0 0.0
    %333 = vmatprep.subr.mxu0 0.0
    %334 = vmatpush2.msra.mxu0 0.0
    %335 = vmatprep.subr.mxu0 0.0
    %336 = vmatpush2.msra.mxu0 0.0
    %337 = vmatprep.subr.mxu0 0.0
    %338 = vmatpush2.msra.mxu0 0.0
    %339 = vmatprep.subr.mxu0 0.0
    %340 = vmatpush2.msra.mxu0 0.0
    %341 = vmatprep.subr.mxu0 0.0
    %342 = vmatpush2.msra.mxu0 0.0
    %343 = vmatprep.subr.mxu0 0.0
    %344 = vmatpush2.msra.mxu0 0.0
    %345 = vmatprep.subr.mxu0 0.0
    %346 = vmatpush2.msra.mxu0 0.0
    %347 = vmatprep.mubr.f32.mxu0 0.0
    %348 = vmatmul.mubr.f32.gmra.mxu0 %v259
    %v349 = vpop.f32.mrf.mxu0
    %v350 = vadd.f32 %v281, %v349
    %v351 = vpop.f32.mrf.mxu0
    %352 = vdwg.mxu0
    %vm353 = vcmask 31744
    %354 = vst.msk [vmem:[%s7] sm:$0xff] %vm353, %v350
    // Predicated region
    $region46: #{tpu_custom_call.1} parent=1 // pred_check
      _
    $region47: #{tpu_custom_call.1} parent=1 // pred_check_branch
      %356 = sbr.rel (0) target = $region49
    $region48: #{tpu_custom_call.1} parent=1 // pred_region
      _
    $region49: #{tpu_custom_call.1} parent=1 // pred_fallthru
      _
    // Predicated region
    $region50: #{tpu_custom_call.1} parent=1 // pred_check
      _
    $region51: #{tpu_custom_call.1} parent=1 // pred_check_branch
      %358 = sbr.rel (0) target = $region53
    $region52: #{tpu_custom_call.1} parent=1 // pred_region
      _
    $region53: #{tpu_custom_call.1} parent=1 // pred_fallthru
      _
    %359 = vsyncpa [#allocation3], 1
    %360 = vsyncpa [#allocation5], 1
    %361 = vsyncpa [#allocation8], 1

</llo_original>
